<compile_context>
chip_gen: v7x
topology: tpu7x:2x2x1
jax: 0.10.0
libtpu: 0.0.40
codegen_flags: <defaults>
</compile_context>

<pallas_src>
import functools

import jax
import jax.numpy as jnp
from jax.experimental import pallas as pl
from jax.experimental.pallas import tpu as pltpu


def _leaky_relu(v, slope=0.2):
    return jnp.where(v >= 0, v, slope * v)


def icnn_kernel(units, x_ref, a_aug_ref, w_last_ref, *refs):
    """Whole ICNN forward for one batch tile.

    units      : static tuple = hidden_units + (1,)
    x_ref      : (tile_b, input_dim + 1)        bf16, last column is ones
    a_aug_ref  : (input_dim + 1, sum(units))    bf16, last row holds biases
    w_last_ref : (1, units[-2])                 f32, transposed final W
    refs       : W_0 ... W_{n_hidden-2}, y_ref
                 W_i : (units[i], units[i+1])   bf16
    """
    w_refs = refs[:-1]          # hidden W matmul layers (n_hidden - 1 of them)
    y_ref = refs[-1]

    x = x_ref[...]

    # Single fused A(x) projection for every layer; biases ride along as the
    # ones-column x augmentation. One MXU push, f32 accumulation.
    ax = jnp.dot(x, a_aug_ref[...], preferred_element_type=jnp.float32)

    # z = sigma(0.2)(A[0](x)); z = z*z   (f32 elementwise, v5e-safe)
    z = _leaky_relu(ax[:, : units[0]])
    z = z * z

    # Hidden convex blocks: z = sigma(0.2)(W_i(z) + A_{i+1}(x))
    off = units[0]
    for i in range(len(w_refs)):
        u = units[i + 1]
        wz = jnp.dot(
            z.astype(w_refs[i].dtype),
            w_refs[i][...],
            preferred_element_type=jnp.float32,
        )
        z = _leaky_relu(wz + ax[:, off : off + u])
        off += u

    # Final scalar head: y = W[-1](z) + A[-1](x).
    # N=1 matmul -> VPU multiply + XLU lane reduction (MXU stays out of the
    # tail of the step; both units are idle at this point).
    y = (
        jnp.sum(z * w_last_ref[...], axis=-1, keepdims=True)
        + ax[:, off : off + 1]
    )
    y_ref[...] = y.astype(y_ref.dtype)


def icnn_forward(x, a_weights, a_biases, w_weights, *, tile_b=None,
                 compute_dtype=jnp.bfloat16):
    """Pallas wrapper: grid over batch tiles, all params resident in VMEM."""
    B, input_dim = x.shape
    units = tuple(int(w.shape[1]) for w in a_weights)  # hidden_units + (1,)
    n_layers = len(units)
    assert n_layers >= 2, "ICNN requires at least one hidden layer"
    assert units[-1] == 1
    assert len(w_weights) == n_layers - 1
    assert len(a_biases) == n_layers

    # Fuse all A projections (weights + biases) into one wide matmul operand:
    # a_aug = [[A_0 | A_1 | ... | A_last], [b_0 | b_1 | ... | b_last]] and the
    # kernel multiplies by x augmented with a ones column.
    a_all = jnp.concatenate(list(a_weights), axis=1)
    b_all = jnp.concatenate([b.reshape(1, -1) for b in a_biases], axis=1)
    a_aug = jnp.concatenate([a_all, b_all], axis=0).astype(compute_dtype)
    x_aug = jnp.concatenate(
        [x, jnp.ones((B, 1), x.dtype)], axis=1
    ).astype(compute_dtype)

    # Hidden W's go through the MXU in bf16; the final (units[-2], 1) head is
    # a VPU multiply + lane reduce, so keep it f32 and pre-transpose it to a
    # (1, units[-2]) row for lane broadcasting.
    w_hidden = [w.astype(compute_dtype) for w in w_weights[:-1]]
    w_last_row = w_weights[-1].reshape(1, -1).astype(jnp.float32)

    # Batch tile: large default to amortize per-step overhead (this tiny model
    # is step-overhead bound, not MXU/HBM bound); multiple of 16 for bf16
    # sublane packing unless it spans the full batch.
    if tile_b is None:
        tile_b = 2048
    tile_b = min(tile_b, B)
    if tile_b != B:
        tile_b = max(16, (tile_b // 16) * 16)

    grid = (pl.cdiv(B, tile_b),)

    in_specs = [
        pl.BlockSpec((tile_b, input_dim + 1), lambda i: (i, 0)),
        pl.BlockSpec(a_aug.shape, lambda i: (0, 0)),
        pl.BlockSpec(w_last_row.shape, lambda i: (0, 0)),
    ]
    args = [x_aug, a_aug, w_last_row]
    for w in w_hidden:
        in_specs.append(pl.BlockSpec(w.shape, lambda i: (0, 0)))
        args.append(w)

    out_specs = pl.BlockSpec((tile_b, 1), lambda i: (i, 0))

    return pl.pallas_call(
        functools.partial(icnn_kernel, units),
        out_shape=jax.ShapeDtypeStruct((B, 1), x.dtype),
        grid=grid,
        in_specs=in_specs,
        out_specs=out_specs,
        compiler_params=pltpu.CompilerParams(
            dimension_semantics=("parallel",),
            vmem_limit_bytes=32 * 1024 * 1024,
        ),
    )(*args)


def icnn_reference(x, a_weights, a_biases, w_weights):
    """Pure-JAX f32 reference mirroring the PyTorch forward."""
    x = x.astype(jnp.float32)
    z = _leaky_relu(x @ a_weights[0] + a_biases[0])
    z = z * z
    n_hidden = len(w_weights)
    for i in range(n_hidden - 1):
        z = _leaky_relu(z @ w_weights[i] + x @ a_weights[i + 1] + a_biases[i + 1])
    return z @ w_weights[-1] + x @ a_weights[-1] + a_biases[-1]


def make_params(key, input_dim, hidden_units, std=0.1):
    """Deterministic synthetic parameters (shapes from ICNN.__init__),
    stored transposed w.r.t. PyTorch so every layer is x @ W + b."""
    units = list(hidden_units) + [1]
    a_weights, a_biases, w_weights = [], [], []
    for odim in units:  # self.A: Linear(input_dim, odim, bias=True)
        key, k1 = jax.random.split(key)
        a_weights.append(std * jax.random.normal(k1, (input_dim, odim), jnp.float32))
        a_biases.append(jnp.zeros((1, odim), jnp.float32))
    for idim, odim in zip(units[:-1], units[1:]):  # self.W: Linear(idim, odim, bias=False)
        key, k1 = jax.random.split(key)
        # non-negative weights (as clamp_w() would enforce) keep the net input-convex
        w_weights.append(jnp.abs(std * jax.random.normal(k1, (idim, odim), jnp.float32)))
    return a_weights, a_biases, w_weights


if __name__ == "__main__":
    B, input_dim = 64, 16
    hidden_units = [32, 32]

    key = jax.random.PRNGKey(0)
    key, kx = jax.random.split(key)
    x = jax.random.normal(kx, (B, input_dim), jnp.float32)

    a_weights, a_biases, w_weights = make_params(key, input_dim, hidden_units)

    # tile_b=16 exercises a multi-step "parallel" grid even at this tiny B
    # (production default is 2048; see icnn_forward).
    y = icnn_forward(x, a_weights, a_biases, w_weights, tile_b=16)
    y = jax.block_until_ready(y)

    y_ref = icnn_reference(x, a_weights, a_biases, w_weights)
    assert y.shape == (B, 1)
    # bf16 matmul operands (f32 accumulation) -> loosened tolerance vs f32 ref.
    assert jnp.allclose(y, y_ref, atol=5e-2, rtol=5e-2), (
        "mismatch vs JAX reference; max abs err = "
        f"{float(jnp.max(jnp.abs(y - y_ref)))}"
    )

    print("KERNEL_OK")
</pallas_src>

<mosaic_0001>
module attributes {stable_mosaic.version = 11 : i64} {
  func.func @icnn_kernel(%arg0: i32, %arg1: memref<16x17xbf16, #tpu.memory_space<vmem>>, %arg2: memref<17x65xbf16, #tpu.memory_space<vmem>>, %arg3: memref<1x32xf32, #tpu.memory_space<vmem>>, %arg4: memref<32x32xbf16, #tpu.memory_space<vmem>>, %arg5: memref<16x1xf32, #tpu.memory_space<vmem>>) attributes {dimension_semantics = [#tpu.dimension_semantics<parallel>], iteration_bounds = array<i64: 4>, scalar_prefetch = 0 : i64, scratch_operands = 0 : i64, tpu.core_type = #tpu.core_type<tc>, window_params = [{transform_indices = @transform_0, window_bounds = array<i64: 16, 17>}, {pipeline_mode = #tpu.pipeline_mode<synchronous>, transform_indices = @transform_1, window_bounds = array<i64: 17, 65>}, {pipeline_mode = #tpu.pipeline_mode<synchronous>, transform_indices = @transform_2, window_bounds = array<i64: 1, 32>}, {pipeline_mode = #tpu.pipeline_mode<synchronous>, transform_indices = @transform_3, window_bounds = array<i64: 32, 32>}, {transform_indices = @transform_4, window_bounds = array<i64: 16, 1>}]} {
    %c0 = arith.constant 0 : index
    %c0_0 = arith.constant 0 : index
    %0 = vector.load %arg1[%c0, %c0_0] : memref<16x17xbf16, #tpu.memory_space<vmem>>, vector<16x17xbf16>
    %c0_1 = arith.constant 0 : index
    %c0_2 = arith.constant 0 : index
    %1 = vector.load %arg2[%c0_1, %c0_2] : memref<17x65xbf16, #tpu.memory_space<vmem>>, vector<17x65xbf16>
    %cst = arith.constant dense<0.000000e+00> : vector<16x65xf32>
    %2 = tpu.matmul %0, %1, %cst {dimension_numbers = #tpu.dot_dimension_numbers<[1], [0], [0], [1], [0, 0, 1, 1], [], []>} : vector<16x17xbf16>, vector<17x65xbf16>, vector<16x65xf32> -> vector<16x65xf32>
    %3 = vector.extract_strided_slice %2 {offsets = [0, 0], sizes = [16, 32], strides = [1, 1]} : vector<16x65xf32> to vector<16x32xf32>
    %cst_3 = arith.constant 0.000000e+00 : f32
    %4 = vector.broadcast %cst_3 : f32 to vector<16x32xf32>
    %5 = arith.cmpf oge, %3, %4 : vector<16x32xf32>
    %cst_4 = arith.constant 2.000000e-01 : f32
    %6 = vector.broadcast %cst_4 : f32 to vector<16x32xf32>
    %7 = arith.mulf %6, %3 : vector<16x32xf32>
    %8 = arith.select %5, %3, %7 : vector<16x32xi1>, vector<16x32xf32>
    %9 = arith.mulf %8, %8 : vector<16x32xf32>
    %10 = arith.truncf %9 : vector<16x32xf32> to vector<16x32xbf16>
    %c0_5 = arith.constant 0 : index
    %c0_6 = arith.constant 0 : index
    %11 = vector.load %arg4[%c0_5, %c0_6] : memref<32x32xbf16, #tpu.memory_space<vmem>>, vector<32x32xbf16>
    %cst_7 = arith.constant dense<0.000000e+00> : vector<16x32xf32>
    %12 = tpu.matmul %10, %11, %cst_7 {dimension_numbers = #tpu.dot_dimension_numbers<[1], [0], [0], [1], [0, 0, 1, 1], [], []>} : vector<16x32xbf16>, vector<32x32xbf16>, vector<16x32xf32> -> vector<16x32xf32>
    %13 = vector.extract_strided_slice %2 {offsets = [0, 32], sizes = [16, 32], strides = [1, 1]} : vector<16x65xf32> to vector<16x32xf32>
    %14 = arith.addf %12, %13 : vector<16x32xf32>
    %cst_8 = arith.constant 0.000000e+00 : f32
    %15 = vector.broadcast %cst_8 : f32 to vector<16x32xf32>
    %16 = arith.cmpf oge, %14, %15 : vector<16x32xf32>
    %cst_9 = arith.constant 2.000000e-01 : f32
    %17 = vector.broadcast %cst_9 : f32 to vector<16x32xf32>
    %18 = arith.mulf %17, %14 : vector<16x32xf32>
    %19 = arith.select %16, %14, %18 : vector<16x32xi1>, vector<16x32xf32>
    %c0_10 = arith.constant 0 : index
    %c0_11 = arith.constant 0 : index
    %20 = vector.load %arg3[%c0_10, %c0_11] : memref<1x32xf32, #tpu.memory_space<vmem>>, vector<1x32xf32>
    %21 = vector.broadcast %20 : vector<1x32xf32> to vector<16x32xf32>
    %22 = arith.mulf %19, %21 : vector<16x32xf32>
    %cst_12 = arith.constant dense<0.000000e+00> : vector<16xf32>
    %23 = vector.multi_reduction <add>, %22, %cst_12 [1] : vector<16x32xf32> to vector<16xf32>
    %24 = vector.shape_cast %23 : vector<16xf32> to vector<16x1xf32>
    %25 = vector.extract_strided_slice %2 {offsets = [0, 64], sizes = [16, 1], strides = [1, 1]} : vector<16x65xf32> to vector<16x1xf32>
    %26 = arith.addf %24, %25 : vector<16x1xf32>
    %c0_13 = arith.constant 0 : index
    %c0_14 = arith.constant 0 : index
    %27 = vector.load %arg5[%c0_13, %c0_14] : memref<16x1xf32, #tpu.memory_space<vmem>>, vector<16x1xf32>
    tpu.vector_store %arg5[%c0_13, %c0_14], %26 {strides = array<i32>} : memref<16x1xf32, #tpu.memory_space<vmem>>, vector<16x1xf32>,
    return
  }
  func.func @transform_0(%arg0: i32) -> (i32, i32) {
    %c0_i32 = arith.constant 0 : i32
    %c0_i32_0 = arith.constant 0 : i32
    return %arg0, %c0_i32 : i32, i32
  }
  func.func @transform_1(%arg0: i32) -> (i32, i32) {
    %c0_i32 = arith.constant 0 : i32
    %c0_i32_0 = arith.constant 0 : i32
    %c0_i32_1 = arith.constant 0 : i32
    return %c0_i32, %c0_i32_0 : i32, i32
  }
  func.func @transform_2(%arg0: i32) -> (i32, i32) {
    %c0_i32 = arith.constant 0 : i32
    %c0_i32_0 = arith.constant 0 : i32
    %c0_i32_1 = arith.constant 0 : i32
    return %c0_i32, %c0_i32_0 : i32, i32
  }
  func.func @transform_3(%arg0: i32) -> (i32, i32) {
    %c0_i32 = arith.constant 0 : i32
    %c0_i32_0 = arith.constant 0 : i32
    %c0_i32_1 = arith.constant 0 : i32
    return %c0_i32, %c0_i32_0 : i32, i32
  }
  func.func @transform_4(%arg0: i32) -> (i32, i32) {
    %c0_i32 = arith.constant 0 : i32
    %c0_i32_0 = arith.constant 0 : i32
    return %arg0, %c0_i32 : i32, i32
  }
}

</mosaic_0001>

<llo_original>
// kernel: tpu_custom_call.1
$region0: #{tpu_custom_call.1}
  #allocation0 [shape = 'u32[]', space=smem, size = 0x4, offset = 0x4, fixed_abs, tag = 'smem constant byte address 0x4 - core index']
  #allocation1 [shape = 'u32[144,128]{1,0:T(1,128)}', space=vmem, size = 0x12000, scoped, tag = 'internal scratch']
  %s0 = inlined_call_operand.vmem [shape: bf16[64,17], index: 0, kind: input, shape index: {}]
  %s1 = inlined_call_operand.vmem [shape: bf16[17,65], index: 1, kind: input, shape index: {}]
  %s2 = inlined_call_operand.vmem [shape: f32[1,32], index: 2, kind: input, shape index: {}]
  %s3 = inlined_call_operand.vmem [shape: bf16[32,32], index: 3, kind: input, shape index: {}]
  %s4 = inlined_call_operand.vmem [shape: f32[64,1], index: 4, kind: output, shape index: {}]
  %s5 = sld [smem:[#allocation0]]
  $region49: #{tpu_custom_call.1} parent=0
    _
  %s7 = ssub.s32 1, %s5
  %s8 = scalar_select 0, %s7, %s5
  loop: start=0, step=1, limit=6
  $region2: #{tpu_custom_call.1} parent=0 // loop_pre_header
    _
  $region3: #{tpu_custom_call.1} parent=0 // loop_header
    %s10 = sphi 0, %s14
    %p11 = scmp.ge.s32.totalorder %s10, 6
    %s20 = sphi 0, %s22
    %s23 = sphi 0, %s20
    %s24 = sphi 0, %s23
    %s40 = sphi 0, %s24
    %s44 = sphi 0, %s44
    %s46 = sphi 0, %s44
    %s47 = sphi 0, %s46
    %s61 = sphi 0, %s47
    %s65 = sphi 0, %s65
    %s67 = sphi 0, %s65
    %s68 = sphi 0, %s67
    %s82 = sphi 0, %s68
    %s86 = sphi 0, %s86
    %s88 = sphi 0, %s86
    %s89 = sphi 0, %s88
    %s103 = sphi 0, %s89
    %s109 = sphi 0, %s111
    %s112 = sphi 0, %s109
    %s113 = sphi 0, %s112
    %s129 = sphi 0, %s113
  $region4: #{tpu_custom_call.1} parent=0 // loop_header_branch
    %13 = sbr.rel (%p11) target = $region8
  $region5: #{tpu_custom_call.1} parent=0 // loop_body
    %s15 = ssub.s32 %s10, 1
    %s16 = ssub.s32 %s10, 2
    %s17 = sadd.s32 %s10, 1
    %s18 = ssub.s32 %s10, %s17
    %p19 = scmp.eq.s32.totalorder %s18, 0
    %s21 = sadd.s32 %s20, 1
    %s22 = scalar_select %p19, %s20, %s21
    %p25 = pneg %p19
    %p26 = scmp.eq.s32.totalorder %s10, 3
    %p27 = por %p25, %p26
    %p28 = scmp.ne.s32.totalorder %s20, %s23
    %p29 = scmp.eq.s32.totalorder %s10, 0
    %p30 = por %p28, %p29
    %p31 = scmp.ne.s32.totalorder %s20, %s23
    %p32 = scmp.eq.s32.totalorder %s15, 3
    %p33 = por %p31, %p32
    %p34 = scmp.ne.s32.totalorder %s23, %s24
    %p35 = scmp.eq.s32.totalorder %s15, 0
    %p36 = por %p34, %p35
    %p37 = scmp.ne.s32.totalorder %s23, %s24
    %p38 = scmp.eq.s32.totalorder %s16, 3
    %p39 = por %p37, %p38
    %p41 = scmp.ne.s32.totalorder %s24, %s40
    %p42 = scmp.eq.s32.totalorder %s16, 0
    %p43 = por %p41, %p42
    %s45 = sadd.s32 %s44, 1
    %p48 = scmp.eq.s32.totalorder %s10, 3
    %p49 = scmp.ne.s32.totalorder %s44, %s46
    %p50 = scmp.eq.s32.totalorder %s10, 0
    %p51 = por %p49, %p50
    %p52 = scmp.ne.s32.totalorder %s44, %s46
    %p53 = scmp.eq.s32.totalorder %s15, 3
    %p54 = por %p52, %p53
    %p55 = scmp.ne.s32.totalorder %s46, %s47
    %p56 = scmp.eq.s32.totalorder %s15, 0
    %p57 = por %p55, %p56
    %p58 = scmp.ne.s32.totalorder %s46, %s47
    %p59 = scmp.eq.s32.totalorder %s16, 3
    %p60 = por %p58, %p59
    %p62 = scmp.ne.s32.totalorder %s47, %s61
    %p63 = scmp.eq.s32.totalorder %s16, 0
    %p64 = por %p62, %p63
    %s66 = sadd.s32 %s65, 1
    %p69 = scmp.eq.s32.totalorder %s10, 3
    %p70 = scmp.ne.s32.totalorder %s65, %s67
    %p71 = scmp.eq.s32.totalorder %s10, 0
    %p72 = por %p70, %p71
    %p73 = scmp.ne.s32.totalorder %s65, %s67
    %p74 = scmp.eq.s32.totalorder %s15, 3
    %p75 = por %p73, %p74
    %p76 = scmp.ne.s32.totalorder %s67, %s68
    %p77 = scmp.eq.s32.totalorder %s15, 0
    %p78 = por %p76, %p77
    %p79 = scmp.ne.s32.totalorder %s67, %s68
    %p80 = scmp.eq.s32.totalorder %s16, 3
    %p81 = por %p79, %p80
    %p83 = scmp.ne.s32.totalorder %s68, %s82
    %p84 = scmp.eq.s32.totalorder %s16, 0
    %p85 = por %p83, %p84
    %s87 = sadd.s32 %s86, 1
    %p90 = scmp.eq.s32.totalorder %s10, 3
    %p91 = scmp.ne.s32.totalorder %s86, %s88
    %p92 = scmp.eq.s32.totalorder %s10, 0
    %p93 = por %p91, %p92
    %p94 = scmp.ne.s32.totalorder %s86, %s88
    %p95 = scmp.eq.s32.totalorder %s15, 3
    %p96 = por %p94, %p95
    %p97 = scmp.ne.s32.totalorder %s88, %s89
    %p98 = scmp.eq.s32.totalorder %s15, 0
    %p99 = por %p97, %p98
    %p100 = scmp.ne.s32.totalorder %s88, %s89
    %p101 = scmp.eq.s32.totalorder %s16, 3
    %p102 = por %p100, %p101
    %p104 = scmp.ne.s32.totalorder %s89, %s103
    %p105 = scmp.eq.s32.totalorder %s16, 0
    %p106 = por %p104, %p105
    %s107 = ssub.s32 %s10, %s17
    %p108 = scmp.eq.s32.totalorder %s107, 0
    %s110 = sadd.s32 %s109, 1
    %s111 = scalar_select %p108, %s109, %s110
    %p114 = pneg %p108
    %p115 = scmp.eq.s32.totalorder %s10, 3
    %p116 = por %p114, %p115
    %p117 = scmp.ne.s32.totalorder %s109, %s112
    %p118 = scmp.eq.s32.totalorder %s10, 0
    %p119 = por %p117, %p118
    %p120 = scmp.ne.s32.totalorder %s109, %s112
    %p121 = scmp.eq.s32.totalorder %s15, 3
    %p122 = por %p120, %p121
    %p123 = scmp.ne.s32.totalorder %s112, %s113
    %p124 = scmp.eq.s32.totalorder %s15, 0
    %p125 = por %p123, %p124
    %p126 = scmp.ne.s32.totalorder %s112, %s113
    %p127 = scmp.eq.s32.totalorder %s16, 3
    %p128 = por %p126, %p127
    %p130 = scmp.ne.s32.totalorder %s113, %s129
    %p131 = scmp.eq.s32.totalorder %s16, 0
    %p132 = por %p130, %p131
    %p133 = scmp.le.s32.totalorder 1, %s10
    %p134 = scmp.lt.s32.totalorder %s10, 5
    %p135 = pnand %p133, %p134
    %p136 = pneg %p135
    // Predicated region
    $region9: #{tpu_custom_call.1} parent=5 // pred_check
      _
    $region10: #{tpu_custom_call.1} parent=5 // pred_check_branch
      %138 = sbr.rel (%p135) target = $region12
    $region11: #{tpu_custom_call.1} parent=5 // pred_region
      %s139 = ssub.s32 %s10, 1
      // Predicated region
      $region13: #{tpu_custom_call.1} parent=11 // pred_check
        %p140 = pneg %p57
      $region14: #{tpu_custom_call.1} parent=11 // pred_check_branch
        %142 = sbr.rel (%p140) target = $region16
      $region15: #{tpu_custom_call.1} parent=11 // pred_region
        _
      $region16: #{tpu_custom_call.1} parent=11 // pred_fallthru
        _
      // Predicated region
      $region17: #{tpu_custom_call.1} parent=11 // pred_check
        %p143 = pneg %p78
      $region18: #{tpu_custom_call.1} parent=11 // pred_check_branch
        %145 = sbr.rel (%p143) target = $region20
      $region19: #{tpu_custom_call.1} parent=11 // pred_region
        _
      $region20: #{tpu_custom_call.1} parent=11 // pred_fallthru
        _
      // Predicated region
      $region21: #{tpu_custom_call.1} parent=11 // pred_check
        %p146 = pneg %p99
      $region22: #{tpu_custom_call.1} parent=11 // pred_check_branch
        %148 = sbr.rel (%p146) target = $region24
      $region23: #{tpu_custom_call.1} parent=11 // pred_region
        _
      $region24: #{tpu_custom_call.1} parent=11 // pred_fallthru
        _
    $region12: #{tpu_custom_call.1} parent=5 // pred_fallthru
      _
    %p149 = scmp.lt.s32.totalorder %s10, 4
    // Predicated region
    $region25: #{tpu_custom_call.1} parent=5 // pred_check
      %p150 = pneg %p149
    $region26: #{tpu_custom_call.1} parent=5 // pred_check_branch
      %152 = sbr.rel (%p150) target = $region28
    $region27: #{tpu_custom_call.1} parent=5 // pred_region
      // Predicated region
      $region29: #{tpu_custom_call.1} parent=27 // pred_check
        %p153 = pneg %p30
      $region30: #{tpu_custom_call.1} parent=27 // pred_check_branch
        %155 = sbr.rel (%p153) target = $region32
      $region31: #{tpu_custom_call.1} parent=27 // pred_region
        %s156 = smul.u32 2, %s10
        %p157 = scmp.lt.s32.totalorder %s156, 7
        %s158 = scalar_select %p157, %s156, 7
        %s159 = smul.addr %s158, 4
        %s160 = scalar_lea.vmem %s0, %s159
        %s161 = smul.u32 2, %s10
      $region32: #{tpu_custom_call.1} parent=27 // pred_fallthru
        _
    $region28: #{tpu_custom_call.1} parent=5 // pred_fallthru
      _
    %p162 = scmp.le.s32.totalorder 1, %s10
    %p163 = scmp.lt.s32.totalorder %s10, 5
    %p164 = pnand %p162, %p163
    %p165 = pneg %p164
    // Predicated region
    $region33: #{tpu_custom_call.1} parent=5 // pred_check
      _
    $region34: #{tpu_custom_call.1} parent=5 // pred_check_branch
      %167 = sbr.rel (%p164) target = $region36
    $region35: #{tpu_custom_call.1} parent=5 // pred_region
      %s168 = ssub.s32 %s10, 1
      %s169 = smul.u32 2, %s15
      %p170 = scmp.lt.s32.totalorder %s169, 7
      %s171 = scalar_select %p170, %s169, 7
      %s172 = smul.addr %s171, 4
      %s173 = scalar_lea.vmem %s0, %s172
      %p174 = pneg %p36
      %p175 = pneg %p33
      %p176 = pneg %p57
      %p177 = pneg %p54
      %p178 = pneg %p78
      %p179 = pneg %p75
      %p180 = pneg %p99
      %p181 = pneg %p96
      %p182 = pneg %p125
      %p183 = pneg %p122
      %s184 = smul.u32 2, %s15
      %p185 = scmp.lt.s32.totalorder %s184, 7
      %s186 = scalar_select %p185, %s184, 7
      %s187 = smul.addr %s186, 8
      %s188 = scalar_lea.vmem %s4, %s187
      %s189 = smul.u32 2, %s15
      %p190 = scmp.lt.s32.totalorder %s189, 7
      %s191 = scalar_select %p190, %s189, 7
      %s192 = smul.addr %s191, 4
      %s193 = scalar_lea.vmem %s0, %s192
      %s194 = smul.u32 2, %s15
      %s195 = smul.u32 2, %s15
      %p196 = scmp.lt.s32.totalorder %s195, 7
      %s197 = scalar_select %p196, %s195, 7
      %s198 = smul.addr %s197, 8
      %s199 = scalar_lea.vmem %s4, %s198
      %s200 = smul.u32 2, %s15
      %v202 = vld [vmem:[%s193] sm:$0xf]
      %v203 = vld [vmem:[%s193 + $0x4] sm:$0xf]
      %v204 = vld [vmem:[%s1] sm:$0xf]
      %v205 = vld [vmem:[%s1 + $0x4] sm:$0xf]
      %v206 = vld [vmem:[%s1 + $0x8] sm:$0x1]
      %v209 = vunpack.c.l.b16 %v202
      %v210 = vunpack.c.l.b16 %v203
      %v211 = vpack.c.b16 %v210, %v209
      %v215 = vunpack.c.l.b16 %v204
      %v216 = vunpack.c.l.b16 %v205
      %v217 = vunpack.c.l.b16 %v206
      %v218 = vpack.c.b16 %v216, %v215
      %v219 = vpack.c.b16 %v217, %v217
      %vm221 = vcmask 138240
      %v223 = vsel %vm221, %v211, 0
      %vm225 = vcmask 1040384
      %v226 = vsel 0, 4294967295, 65535
      %v227 = vsel %vm225, %v226, 0
      %v229 = vand.u32 %v219, %v227
      %231 = vmatprep.subr.bf16.mxu0 0
      %232 = vmatpush1.bf16.msra.mxu0 %v218
      %233 = vmatprep.subr.bf16.mxu0 0
      %234 = vmatpush1.bf16.msra.mxu0 %v229
      %235 = vmatprep.subr.bf16.mxu0 0
      %236 = vmatpush1.bf16.msra.mxu0 0
      %237 = vmatprep.subr.bf16.mxu0 0
      %238 = vmatpush1.bf16.msra.mxu0 0
      %239 = vmatprep.subr.bf16.mxu0 0
      %240 = vmatpush1.bf16.msra.mxu0 0
      %241 = vmatprep.subr.bf16.mxu0 0
      %242 = vmatpush1.bf16.msra.mxu0 0
      %243 = vmatprep.subr.bf16.mxu0 0
      %244 = vmatpush1.bf16.msra.mxu0 0
      %245 = vmatprep.subr.bf16.mxu0 0
      %246 = vmatpush1.bf16.msra.mxu0 0
      %247 = vmatprep.subr.bf16.mxu0 0
      %248 = vmatpush1.bf16.msra.mxu0 0
      %249 = vmatprep.subr.bf16.mxu0 0
      %250 = vmatpush1.bf16.msra.mxu0 0
      %251 = vmatprep.subr.bf16.mxu0 0
      %252 = vmatpush1.bf16.msra.mxu0 0
      %253 = vmatprep.subr.bf16.mxu0 0
      %254 = vmatpush1.bf16.msra.mxu0 0
      %255 = vmatprep.subr.bf16.mxu0 0
      %256 = vmatpush1.bf16.msra.mxu0 0
      %257 = vmatprep.subr.bf16.mxu0 0
      %258 = vmatpush1.bf16.msra.mxu0 0
      %259 = vmatprep.subr.bf16.mxu0 0
      %260 = vmatpush1.bf16.msra.mxu0 0
      %261 = vmatprep.subr.bf16.mxu0 0
      %262 = vmatpush1.bf16.msra.mxu0 0
      %263 = vmatprep.mubr.bf16.mxu0 0
      %264 = vmatmul.mubr.bf16.gmra.mrb[0].mxu0 %v223
      %v265 = vpop.f32.mrb[0].mxu0
      %v266 = vadd.f32 0.0, %v265
      %v267 = vpop.f32.mrb[0].mxu0
      %v268 = vpop.f32.mrb[0].mxu0
      %v269 = vadd.f32 0.0, %v268
      %v270 = vpop.f32.mrb[0].mxu0
      %271 = vdwg.mxu0
      %vm272 = vcmp.ge.f32.partialorder %v266, 0.0
      %vm273 = vcmp.ge.f32.partialorder %v269, 0.0
      %v274 = vmul.f32 %v266, 0.2
      %v275 = vmul.f32 %v269, 0.2
      %v276 = vsel %vm272, %v266, %v274
      %v277 = vsel %vm273, %v269, %v275
      %v278 = vmul.f32 %v276, %v276
      %v279 = vmul.f32 %v277, %v277
      %v280 = vpack.c.bf16 %v279, %v278
      %v281 = vld [vmem:[%s3] sm:$0xf]
      %v282 = vld [vmem:[%s3 + $0x4] sm:$0xf]
      %v283 = vld [vmem:[%s3 + $0x8] sm:$0xf]
      %v284 = vld [vmem:[%s3 + $0xc] sm:$0xf]
      %v289 = vunpack.c.l.b16 %v281
      %v290 = vunpack.c.l.b16 %v282
      %v291 = vunpack.c.l.b16 %v283
      %v292 = vunpack.c.l.b16 %v284
      %v293 = vpack.c.b16 %v290, %v289
      %v294 = vpack.c.b16 %v292, %v291
      %299 = vrot.lane.b32.xlu0 %v266, 96
      %v300 = vpop.permute.xlu0 %299
      %301 = vrot.lane.b32.xlu0 %v269, 96
      %v302 = vpop.permute.xlu0 %301
      %vm305 = vcmask 261120
      %v307 = vsel %vm305, %v280, 0
      %309 = vmatprep.subr.bf16.mxu0 0
      %310 = vmatpush1.bf16.msra.mxu0 %v293
      %311 = vmatprep.subr.bf16.mxu0 0
      %312 = vmatpush1.bf16.msra.mxu0 %v294
      %313 = vmatprep.subr.bf16.mxu0 0
      %314 = vmatpush1.bf16.msra.mxu0 0
      %315 = vmatprep.subr.bf16.mxu0 0
      %316 = vmatpush1.bf16.msra.mxu0 0
      %317 = vmatprep.subr.bf16.mxu0 0
      %318 = vmatpush1.bf16.msra.mxu0 0
      %319 = vmatprep.subr.bf16.mxu0 0
      %320 = vmatpush1.bf16.msra.mxu0 0
      %321 = vmatprep.subr.bf16.mxu0 0
      %322 = vmatpush1.bf16.msra.mxu0 0
      %323 = vmatprep.subr.bf16.mxu0 0
      %324 = vmatpush1.bf16.msra.mxu0 0
      %325 = vmatprep.subr.bf16.mxu0 0
      %326 = vmatpush1.bf16.msra.mxu0 0
      %327 = vmatprep.subr.bf16.mxu0 0
      %328 = vmatpush1.bf16.msra.mxu0 0
      %329 = vmatprep.subr.bf16.mxu0 0
      %330 = vmatpush1.bf16.msra.mxu0 0
      %331 = vmatprep.subr.bf16.mxu0 0
      %332 = vmatpush1.bf16.msra.mxu0 0
      %333 = vmatprep.subr.bf16.mxu0 0
      %334 = vmatpush1.bf16.msra.mxu0 0
      %335 = vmatprep.subr.bf16.mxu0 0
      %336 = vmatpush1.bf16.msra.mxu0 0
      %337 = vmatprep.subr.bf16.mxu0 0
      %338 = vmatpush1.bf16.msra.mxu0 0
      %339 = vmatprep.subr.bf16.mxu0 0
      %340 = vmatpush1.bf16.msra.mxu0 0
      %341 = vmatprep.mubr.bf16.mxu0 0
      %342 = vmatmul.mubr.bf16.gmra.mrb[0].mxu0 %v307
      %v343 = vpop.f32.mrb[0].mxu0
      %v344 = vadd.f32 %v300, %v343
      %v345 = vpop.f32.mrb[0].mxu0
      %v346 = vpop.f32.mrb[0].mxu0
      %v347 = vadd.f32 %v302, %v346
      %v348 = vpop.f32.mrb[0].mxu0
      %349 = vdwg.mxu0
      %vm350 = vcmp.ge.f32.partialorder %v344, 0.0
      %vm351 = vcmp.ge.f32.partialorder %v347, 0.0
      %v352 = vmul.f32 %v344, 0.2
      %v353 = vmul.f32 %v347, 0.2
      %v354 = vsel %vm350, %v344, %v352
      %v355 = vsel %vm351, %v347, %v353
      %v356 = vld [vmem:[%s2] sm:$0x1]
      %v358 = vlaneseq
      %v359 = vshrl.u32 %v358, 7
      %v360 = vsub.s32 0, %v359
      %v361 = vrot.slane %v356, %v360
      %v363 = vmul.f32 %v354, %v361
      %v364 = vmul.f32 %v355, %v361
      %v365 = vsel %vm305, %v363, 0.0
      %366 = vadd.xlane.f32.xlu0 %v365
      %v367 = vpop.xlane.xlu0 %366
      %v368 = vsel %vm305, %v364, 0.0
      %369 = vadd.xlane.f32.xlu0 %v368
      %v370 = vpop.xlane.xlu0 %369
      %v371 = vadd.f32 %v367, %v266
      %v372 = vadd.f32 %v370, %v269
      %375 = vrot.lane.b32.xlu0 %v371, 64
      %v376 = vpop.permute.xlu0 %375
      %377 = vrot.lane.b32.xlu0 %v372, 64
      %v378 = vpop.permute.xlu0 %377
      %vm381 = vcmask 7168
      %382 = vst.msk [vmem:[%s199] sm:$0xff] %vm381, %v376
      %383 = vst.msk [vmem:[%s199 + $0x8] sm:$0xff] %vm381, %v378
      %s384 = smul.u32 2, %s15
      %p385 = scmp.lt.s32.totalorder %s384, 7
      %s386 = scalar_select %p385, %s384, 7
      %s387 = smul.addr %s386, 8
      %s388 = scalar_lea.vmem %s4, %s387
      // Predicated region
      $region37: #{tpu_custom_call.1} parent=35 // pred_check
        %p389 = pneg %p122
      $region38: #{tpu_custom_call.1} parent=35 // pred_check_branch
        %391 = sbr.rel (%p389) target = $region40
      $region39: #{tpu_custom_call.1} parent=35 // pred_region
        %s392 = smul.u32 2, %s15
      $region40: #{tpu_custom_call.1} parent=35 // pred_fallthru
        _
    $region36: #{tpu_custom_call.1} parent=5 // pred_fallthru
      _
    %p393 = scmp.le.s32.totalorder 2, %s10
    // Predicated region
    $region41: #{tpu_custom_call.1} parent=5 // pred_check
      %p394 = pneg %p393
    $region42: #{tpu_custom_call.1} parent=5 // pred_check_branch
      %396 = sbr.rel (%p394) target = $region44
    $region43: #{tpu_custom_call.1} parent=5 // pred_region
      %s397 = ssub.s32 %s10, 2
      // Predicated region
      $region45: #{tpu_custom_call.1} parent=43 // pred_check
        %p398 = pneg %p128
      $region46: #{tpu_custom_call.1} parent=43 // pred_check_branch
        %400 = sbr.rel (%p398) target = $region48
      $region47: #{tpu_custom_call.1} parent=43 // pred_region
        %s401 = smul.u32 2, %s16
        %p402 = scmp.lt.s32.totalorder %s401, 7
        %s403 = scalar_select %p402, %s401, 7
        %s404 = smul.addr %s403, 8
        %s405 = scalar_lea.vmem %s4, %s404
      $region48: #{tpu_custom_call.1} parent=43 // pred_fallthru
        _
    $region44: #{tpu_custom_call.1} parent=5 // pred_fallthru
      _
  $region6: #{tpu_custom_call.1} parent=0 // loop_footer
    %s14 = sadd.s32 1, %s10
  $region7: #{tpu_custom_call.1} parent=0 // loop_footer_branch
    %9 = sbr.rel target = $region3
  $region8: #{tpu_custom_call.1} parent=0 // loop_exit
    _

</llo_original>
